<compile_context>
chip_gen: v7x
topology: tpu7x:2x2x1
jax: 0.10.0
libtpu: 0.0.40
codegen_flags: <defaults>
</compile_context>

<pallas_src>
import functools

import jax
import jax.numpy as jnp
from jax import lax
from jax.experimental import pallas as pl
from jax.experimental.pallas import tpu as pltpu


def _pair(v):
    return (v, v) if isinstance(v, int) else tuple(v)


def _avg_pool_kernel(x_ref, o_ref, *, kh, kw, sh, sw, dh, dw, ph, pw, inv_n):
    """One (batch, channel-block) tile.

    x_ref: (CB, H,  W )  raw (unpadded) input planes in VMEM, W on lanes
    o_ref: (CB, OH, OW)  pooled output planes in VMEM, OW on lanes
    """
    cb, h, w = x_ref.shape
    _, oh, ow = o_ref.shape

    # H-pass selection matrix A (OH, H): A[oy, r] = 1 iff r == oy*sh + i*dh - ph
    # for some tap i.  Out-of-range (padded) taps match nothing -> contribute 0.
    r_idx = lax.broadcasted_iota(jnp.int32, (oh, h), 1)
    oy_idx = lax.broadcasted_iota(jnp.int32, (oh, h), 0)
    a_mask = jnp.zeros((oh, h), jnp.bool_)
    for i in range(kh):
        a_mask = jnp.logical_or(a_mask, r_idx == oy_idx * sh + i * dh - ph)
    a_mat = a_mask.astype(jnp.float32)                    # (OH, H)

    # W-pass selection matrix M (W, OW): M[c, ox] = 1 iff c == ox*sw + j*dw - pw.
    c_idx = lax.broadcasted_iota(jnp.int32, (w, ow), 0)
    ox_idx = lax.broadcasted_iota(jnp.int32, (w, ow), 1)
    m_mask = jnp.zeros((w, ow), jnp.bool_)
    for j in range(kw):
        m_mask = jnp.logical_or(m_mask, c_idx == ox_idx * sw + j * dw - pw)
    m_mat = m_mask.astype(jnp.float32)                    # (W, OW)

    # Depthwise pooling: channels are independent; static unroll over the small
    # channel block, two tiny MXU matmuls per channel, f32 accumulation.
    for c in range(cb):
        xc = x_ref[c].astype(jnp.float32)                              # (H, W)
        rp = jnp.dot(xc, m_mat, preferred_element_type=jnp.float32)    # (H, OW)
        oc = jnp.dot(a_mat, rp, preferred_element_type=jnp.float32)    # (OH, OW)
        o_ref[c] = (oc * inv_n).astype(o_ref.dtype)


def avg_pool2d_with_conv(x_nchw, kernel_size, stride, dilation=1, padding=0):
    kh, kw = _pair(kernel_size)
    sh, sw = _pair(stride)
    dh, dw = _pair(dilation)
    ph, pw = _pair(padding)

    N, C, H, W = x_nchw.shape

    # Uniform depthwise weights (C,1,kh,kw) of value 1/(kh*kw) fold into a
    # scalar; no device-side weight tensor, no host sync.
    inv_n = 1.0 / float(kh * kw)

    # Output spatial size, same formula as torch.nn.functional.conv2d.
    oh = (H + 2 * ph - dh * (kh - 1) - 1) // sh + 1
    ow = (W + 2 * pw - dw * (kw - 1) - 1) // sw + 1

    # Channel-block size: keep each input block <= ~2 MiB so the double-buffered
    # pipeline stays far below the scoped-VMEM default on v5e/v6e/v7x; also cap
    # the static per-channel unroll.
    itemsize = jnp.dtype(x_nchw.dtype).itemsize
    cb = max(1, min(C, (2 * 1024 * 1024) // max(1, H * W * itemsize)))
    cb = int(min(cb, 16))
    grid = (N, pl.cdiv(C, cb))

    kernel = functools.partial(
        _avg_pool_kernel,
        kh=kh, kw=kw, sh=sh, sw=sw, dh=dh, dw=dw, ph=ph, pw=pw, inv_n=inv_n)

    return pl.pallas_call(
        kernel,
        out_shape=jax.ShapeDtypeStruct((N, C, oh, ow), x_nchw.dtype),
        grid_spec=pltpu.PrefetchScalarGridSpec(
            num_scalar_prefetch=0,
            grid=grid,
            in_specs=[pl.BlockSpec((pl.Squeezed(), cb, H, W),
                                   lambda n, c: (n, c, 0, 0))],
            out_specs=pl.BlockSpec((pl.Squeezed(), cb, oh, ow),
                                   lambda n, c: (n, c, 0, 0)),
        ),
        compiler_params=pltpu.CompilerParams(
            dimension_semantics=("parallel", "parallel")),
    )(x_nchw)


def _reference(x_nchw, kernel_size, stride, dilation, padding):
    """Pure-JAX reference: depthwise conv with uniform 1/n weights (F.conv2d)."""
    kh, kw = _pair(kernel_size)
    sh, sw = _pair(stride)
    dh, dw = _pair(dilation)
    ph, pw = _pair(padding)
    N, C, H, W = x_nchw.shape
    w = jnp.ones((kh, kw, 1, C), x_nchw.dtype) / float(kh * kw)
    y = jax.lax.conv_general_dilated(
        jnp.transpose(x_nchw, (0, 2, 3, 1)), w,
        window_strides=(sh, sw),
        padding=[(ph, ph), (pw, pw)],
        rhs_dilation=(dh, dw),
        dimension_numbers=("NHWC", "HWIO", "NHWC"),
        feature_group_count=C)
    return jnp.transpose(y, (0, 3, 1, 2))


if __name__ == "__main__":
    key = jax.random.PRNGKey(0)
    x = jax.random.normal(key, (2, 4, 16, 16), dtype=jnp.float32)

    configs = [
        # (kernel_size, stride, dilation, padding)
        ((3, 3), (2, 2), 2, 2),
        ((2, 3), (1, 2), 1, (1, 0)),
    ]
    for ks, st, dil, pad in configs:
        out = avg_pool2d_with_conv(x, ks, st, dil, pad)
        out = jax.block_until_ready(out)
        ref = _reference(x, ks, st, dil, pad)
        assert out.shape == ref.shape, (ks, st, dil, pad, out.shape, ref.shape)
        assert jnp.allclose(out, ref, atol=1e-5, rtol=1e-5), (
            "mismatch vs reference", ks, st, dil, pad)

    print("KERNEL_OK")
</pallas_src>

<mosaic_0001>
module attributes {stable_mosaic.version = 11 : i64} {
  func.func @_avg_pool_kernel(%arg0: i32, %arg1: i32, %arg2: memref<1x4x16x16xf32, #tpu.memory_space<vmem>>, %arg3: memref<1x4x8x8xf32, #tpu.memory_space<vmem>>) attributes {dimension_semantics = [#tpu.dimension_semantics<parallel>, #tpu.dimension_semantics<parallel>], iteration_bounds = array<i64: 2, 1>, scalar_prefetch = 0 : i64, scratch_operands = 0 : i64, tpu.core_type = #tpu.core_type<tc>, window_params = [{transform_indices = @transform_0, window_bounds = array<i64: 1, 4, 16, 16>}, {transform_indices = @transform_1, window_bounds = array<i64: 1, 4, 8, 8>}]} {
    %0 = tpu.iota {dimensions = array<i32: 1>} : vector<8x16xi32>
    %1 = tpu.iota {dimensions = array<i32: 0>} : vector<8x16xi32>
    %false = arith.constant false
    %2 = vector.broadcast %false : i1 to vector<8x16xi1>
    %c2_i32 = arith.constant 2 : i32
    %3 = vector.broadcast %c2_i32 : i32 to vector<8x16xi32>
    %4 = arith.muli %1, %3 : vector<8x16xi32>
    %c0_i32 = arith.constant 0 : i32
    %5 = vector.broadcast %c0_i32 : i32 to vector<8x16xi32>
    %6 = arith.addi %4, %5 : vector<8x16xi32>
    %c2_i32_0 = arith.constant 2 : i32
    %7 = vector.broadcast %c2_i32_0 : i32 to vector<8x16xi32>
    %8 = arith.subi %6, %7 : vector<8x16xi32>
    %9 = arith.cmpi eq, %0, %8 : vector<8x16xi32>
    %10 = arith.ori %2, %9 : vector<8x16xi1>
    %c2_i32_1 = arith.constant 2 : i32
    %11 = vector.broadcast %c2_i32_1 : i32 to vector<8x16xi32>
    %12 = arith.muli %1, %11 : vector<8x16xi32>
    %c2_i32_2 = arith.constant 2 : i32
    %13 = vector.broadcast %c2_i32_2 : i32 to vector<8x16xi32>
    %14 = arith.addi %12, %13 : vector<8x16xi32>
    %c2_i32_3 = arith.constant 2 : i32
    %15 = vector.broadcast %c2_i32_3 : i32 to vector<8x16xi32>
    %16 = arith.subi %14, %15 : vector<8x16xi32>
    %17 = arith.cmpi eq, %0, %16 : vector<8x16xi32>
    %18 = arith.ori %10, %17 : vector<8x16xi1>
    %c2_i32_4 = arith.constant 2 : i32
    %19 = vector.broadcast %c2_i32_4 : i32 to vector<8x16xi32>
    %20 = arith.muli %1, %19 : vector<8x16xi32>
    %c4_i32 = arith.constant 4 : i32
    %21 = vector.broadcast %c4_i32 : i32 to vector<8x16xi32>
    %22 = arith.addi %20, %21 : vector<8x16xi32>
    %c2_i32_5 = arith.constant 2 : i32
    %23 = vector.broadcast %c2_i32_5 : i32 to vector<8x16xi32>
    %24 = arith.subi %22, %23 : vector<8x16xi32>
    %25 = arith.cmpi eq, %0, %24 : vector<8x16xi32>
    %26 = arith.ori %18, %25 : vector<8x16xi1>
    %27 = arith.extui %26 : vector<8x16xi1> to vector<8x16xi32>
    %28 = arith.sitofp %27 : vector<8x16xi32> to vector<8x16xf32>
    %29 = tpu.iota {dimensions = array<i32: 0>} : vector<16x8xi32>
    %30 = tpu.iota {dimensions = array<i32: 1>} : vector<16x8xi32>
    %false_6 = arith.constant false
    %31 = vector.broadcast %false_6 : i1 to vector<16x8xi1>
    %c2_i32_7 = arith.constant 2 : i32
    %32 = vector.broadcast %c2_i32_7 : i32 to vector<16x8xi32>
    %33 = arith.muli %30, %32 : vector<16x8xi32>
    %c0_i32_8 = arith.constant 0 : i32
    %34 = vector.broadcast %c0_i32_8 : i32 to vector<16x8xi32>
    %35 = arith.addi %33, %34 : vector<16x8xi32>
    %c2_i32_9 = arith.constant 2 : i32
    %36 = vector.broadcast %c2_i32_9 : i32 to vector<16x8xi32>
    %37 = arith.subi %35, %36 : vector<16x8xi32>
    %38 = arith.cmpi eq, %29, %37 : vector<16x8xi32>
    %39 = arith.ori %31, %38 : vector<16x8xi1>
    %c2_i32_10 = arith.constant 2 : i32
    %40 = vector.broadcast %c2_i32_10 : i32 to vector<16x8xi32>
    %41 = arith.muli %30, %40 : vector<16x8xi32>
    %c2_i32_11 = arith.constant 2 : i32
    %42 = vector.broadcast %c2_i32_11 : i32 to vector<16x8xi32>
    %43 = arith.addi %41, %42 : vector<16x8xi32>
    %c2_i32_12 = arith.constant 2 : i32
    %44 = vector.broadcast %c2_i32_12 : i32 to vector<16x8xi32>
    %45 = arith.subi %43, %44 : vector<16x8xi32>
    %46 = arith.cmpi eq, %29, %45 : vector<16x8xi32>
    %47 = arith.ori %39, %46 : vector<16x8xi1>
    %c2_i32_13 = arith.constant 2 : i32
    %48 = vector.broadcast %c2_i32_13 : i32 to vector<16x8xi32>
    %49 = arith.muli %30, %48 : vector<16x8xi32>
    %c4_i32_14 = arith.constant 4 : i32
    %50 = vector.broadcast %c4_i32_14 : i32 to vector<16x8xi32>
    %51 = arith.addi %49, %50 : vector<16x8xi32>
    %c2_i32_15 = arith.constant 2 : i32
    %52 = vector.broadcast %c2_i32_15 : i32 to vector<16x8xi32>
    %53 = arith.subi %51, %52 : vector<16x8xi32>
    %54 = arith.cmpi eq, %29, %53 : vector<16x8xi32>
    %55 = arith.ori %47, %54 : vector<16x8xi1>
    %56 = arith.extui %55 : vector<16x8xi1> to vector<16x8xi32>
    %57 = arith.sitofp %56 : vector<16x8xi32> to vector<16x8xf32>
    %c0 = arith.constant 0 : index
    %c0_16 = arith.constant 0 : index
    %c0_17 = arith.constant 0 : index
    %c0_18 = arith.constant 0 : index
    %58 = vector.load %arg2[%c0, %c0_16, %c0_17, %c0_18] : memref<1x4x16x16xf32, #tpu.memory_space<vmem>>, vector<1x1x16x16xf32>
    %59 = vector.shape_cast %58 : vector<1x1x16x16xf32> to vector<16x16xf32>
    %cst = arith.constant dense<0.000000e+00> : vector<16x8xf32>
    %60 = tpu.matmul %59, %57, %cst {dimension_numbers = #tpu.dot_dimension_numbers<[1], [0], [0], [1], [0, 0, 1, 1], [], []>} : vector<16x16xf32>, vector<16x8xf32>, vector<16x8xf32> -> vector<16x8xf32>
    %cst_19 = arith.constant dense<0.000000e+00> : vector<8x8xf32>
    %61 = tpu.matmul %28, %60, %cst_19 {dimension_numbers = #tpu.dot_dimension_numbers<[1], [0], [0], [1], [0, 0, 1, 1], [], []>} : vector<8x16xf32>, vector<16x8xf32>, vector<8x8xf32> -> vector<8x8xf32>
    %cst_20 = arith.constant 0.111111112 : f32
    %62 = vector.broadcast %cst_20 : f32 to vector<8x8xf32>
    %63 = arith.mulf %61, %62 : vector<8x8xf32>
    %c0_21 = arith.constant 0 : index
    %c0_22 = arith.constant 0 : index
    %c0_23 = arith.constant 0 : index
    %c0_24 = arith.constant 0 : index
    %64 = vector.load %arg3[%c0_21, %c0_22, %c0_23, %c0_24] : memref<1x4x8x8xf32, #tpu.memory_space<vmem>>, vector<1x1x8x8xf32>
    %65 = vector.shape_cast %64 : vector<1x1x8x8xf32> to vector<8x8xf32>
    %66 = vector.shape_cast %63 : vector<8x8xf32> to vector<1x1x8x8xf32>
    tpu.vector_store %arg3[%c0_21, %c0_22, %c0_23, %c0_24], %66 {strides = array<i32>} : memref<1x4x8x8xf32, #tpu.memory_space<vmem>>, vector<1x1x8x8xf32>,
    %c0_25 = arith.constant 0 : index
    %c1 = arith.constant 1 : index
    %c0_26 = arith.constant 0 : index
    %c0_27 = arith.constant 0 : index
    %67 = vector.load %arg2[%c0_25, %c1, %c0_26, %c0_27] : memref<1x4x16x16xf32, #tpu.memory_space<vmem>>, vector<1x1x16x16xf32>
    %68 = vector.shape_cast %67 : vector<1x1x16x16xf32> to vector<16x16xf32>
    %cst_28 = arith.constant dense<0.000000e+00> : vector<16x8xf32>
    %69 = tpu.matmul %68, %57, %cst_28 {dimension_numbers = #tpu.dot_dimension_numbers<[1], [0], [0], [1], [0, 0, 1, 1], [], []>} : vector<16x16xf32>, vector<16x8xf32>, vector<16x8xf32> -> vector<16x8xf32>
    %cst_29 = arith.constant dense<0.000000e+00> : vector<8x8xf32>
    %70 = tpu.matmul %28, %69, %cst_29 {dimension_numbers = #tpu.dot_dimension_numbers<[1], [0], [0], [1], [0, 0, 1, 1], [], []>} : vector<8x16xf32>, vector<16x8xf32>, vector<8x8xf32> -> vector<8x8xf32>
    %cst_30 = arith.constant 0.111111112 : f32
    %71 = vector.broadcast %cst_30 : f32 to vector<8x8xf32>
    %72 = arith.mulf %70, %71 : vector<8x8xf32>
    %c0_31 = arith.constant 0 : index
    %c1_32 = arith.constant 1 : index
    %c0_33 = arith.constant 0 : index
    %c0_34 = arith.constant 0 : index
    %73 = vector.load %arg3[%c0_31, %c1_32, %c0_33, %c0_34] : memref<1x4x8x8xf32, #tpu.memory_space<vmem>>, vector<1x1x8x8xf32>
    %74 = vector.shape_cast %73 : vector<1x1x8x8xf32> to vector<8x8xf32>
    %75 = vector.shape_cast %72 : vector<8x8xf32> to vector<1x1x8x8xf32>
    tpu.vector_store %arg3[%c0_31, %c1_32, %c0_33, %c0_34], %75 {strides = array<i32>} : memref<1x4x8x8xf32, #tpu.memory_space<vmem>>, vector<1x1x8x8xf32>,
    %c0_35 = arith.constant 0 : index
    %c2 = arith.constant 2 : index
    %c0_36 = arith.constant 0 : index
    %c0_37 = arith.constant 0 : index
    %76 = vector.load %arg2[%c0_35, %c2, %c0_36, %c0_37] : memref<1x4x16x16xf32, #tpu.memory_space<vmem>>, vector<1x1x16x16xf32>
    %77 = vector.shape_cast %76 : vector<1x1x16x16xf32> to vector<16x16xf32>
    %cst_38 = arith.constant dense<0.000000e+00> : vector<16x8xf32>
    %78 = tpu.matmul %77, %57, %cst_38 {dimension_numbers = #tpu.dot_dimension_numbers<[1], [0], [0], [1], [0, 0, 1, 1], [], []>} : vector<16x16xf32>, vector<16x8xf32>, vector<16x8xf32> -> vector<16x8xf32>
    %cst_39 = arith.constant dense<0.000000e+00> : vector<8x8xf32>
    %79 = tpu.matmul %28, %78, %cst_39 {dimension_numbers = #tpu.dot_dimension_numbers<[1], [0], [0], [1], [0, 0, 1, 1], [], []>} : vector<8x16xf32>, vector<16x8xf32>, vector<8x8xf32> -> vector<8x8xf32>
    %cst_40 = arith.constant 0.111111112 : f32
    %80 = vector.broadcast %cst_40 : f32 to vector<8x8xf32>
    %81 = arith.mulf %79, %80 : vector<8x8xf32>
    %c0_41 = arith.constant 0 : index
    %c2_42 = arith.constant 2 : index
    %c0_43 = arith.constant 0 : index
    %c0_44 = arith.constant 0 : index
    %82 = vector.load %arg3[%c0_41, %c2_42, %c0_43, %c0_44] : memref<1x4x8x8xf32, #tpu.memory_space<vmem>>, vector<1x1x8x8xf32>
    %83 = vector.shape_cast %82 : vector<1x1x8x8xf32> to vector<8x8xf32>
    %84 = vector.shape_cast %81 : vector<8x8xf32> to vector<1x1x8x8xf32>
    tpu.vector_store %arg3[%c0_41, %c2_42, %c0_43, %c0_44], %84 {strides = array<i32>} : memref<1x4x8x8xf32, #tpu.memory_space<vmem>>, vector<1x1x8x8xf32>,
    %c0_45 = arith.constant 0 : index
    %c3 = arith.constant 3 : index
    %c0_46 = arith.constant 0 : index
    %c0_47 = arith.constant 0 : index
    %85 = vector.load %arg2[%c0_45, %c3, %c0_46, %c0_47] : memref<1x4x16x16xf32, #tpu.memory_space<vmem>>, vector<1x1x16x16xf32>
    %86 = vector.shape_cast %85 : vector<1x1x16x16xf32> to vector<16x16xf32>
    %cst_48 = arith.constant dense<0.000000e+00> : vector<16x8xf32>
    %87 = tpu.matmul %86, %57, %cst_48 {dimension_numbers = #tpu.dot_dimension_numbers<[1], [0], [0], [1], [0, 0, 1, 1], [], []>} : vector<16x16xf32>, vector<16x8xf32>, vector<16x8xf32> -> vector<16x8xf32>
    %cst_49 = arith.constant dense<0.000000e+00> : vector<8x8xf32>
    %88 = tpu.matmul %28, %87, %cst_49 {dimension_numbers = #tpu.dot_dimension_numbers<[1], [0], [0], [1], [0, 0, 1, 1], [], []>} : vector<8x16xf32>, vector<16x8xf32>, vector<8x8xf32> -> vector<8x8xf32>
    %cst_50 = arith.constant 0.111111112 : f32
    %89 = vector.broadcast %cst_50 : f32 to vector<8x8xf32>
    %90 = arith.mulf %88, %89 : vector<8x8xf32>
    %c0_51 = arith.constant 0 : index
    %c3_52 = arith.constant 3 : index
    %c0_53 = arith.constant 0 : index
    %c0_54 = arith.constant 0 : index
    %91 = vector.load %arg3[%c0_51, %c3_52, %c0_53, %c0_54] : memref<1x4x8x8xf32, #tpu.memory_space<vmem>>, vector<1x1x8x8xf32>
    %92 = vector.shape_cast %91 : vector<1x1x8x8xf32> to vector<8x8xf32>
    %93 = vector.shape_cast %90 : vector<8x8xf32> to vector<1x1x8x8xf32>
    tpu.vector_store %arg3[%c0_51, %c3_52, %c0_53, %c0_54], %93 {strides = array<i32>} : memref<1x4x8x8xf32, #tpu.memory_space<vmem>>, vector<1x1x8x8xf32>,
    return
  }
  func.func @transform_0(%arg0: i32, %arg1: i32) -> (i32, i32, i32, i32) {
    %c0_i32 = arith.constant 0 : i32
    %c0_i32_0 = arith.constant 0 : i32
    %c0_i32_1 = arith.constant 0 : i32
    return %arg0, %arg1, %c0_i32, %c0_i32_0 : i32, i32, i32, i32
  }
  func.func @transform_1(%arg0: i32, %arg1: i32) -> (i32, i32, i32, i32) {
    %c0_i32 = arith.constant 0 : i32
    %c0_i32_0 = arith.constant 0 : i32
    %c0_i32_1 = arith.constant 0 : i32
    return %arg0, %arg1, %c0_i32, %c0_i32_0 : i32, i32, i32, i32
  }
}

</mosaic_0001>

<llo_original>
// kernel: tpu_custom_call.1
$region0: #{tpu_custom_call.1}
  #allocation0 [shape = 'u32[]', space=smem, size = 0x4, offset = 0x4, fixed_abs, tag = 'smem constant byte address 0x4 - core index']
  #allocation1 [shape = 'u32[144,128]{1,0:T(1,128)}', space=vmem, size = 0x12000, scoped, tag = 'internal scratch']
  %s0 = inlined_call_operand.hbm [shape: f32[2,4,16,16], index: 0, kind: input, shape index: {}]
  %s1 = inlined_call_operand.hbm [shape: f32[2,4,8,8], index: 1, kind: output, shape index: {}]
  %s2 = sld [smem:[#allocation0]]
  $region41: #{tpu_custom_call.1} parent=0
    _
  %s4 = ssub.s32 1, %s2
  %s5 = scalar_select 0, %s4, %s2
  $region1: #{tpu_custom_call.1} parent=0
    #allocation2 [shape = 'u8[65536]{0}', space=vmem, size = 0x10000, scoped, tag = 'input window, operand 0']
    #allocation3 [shape = 's32[2]{0}', space=sflag, size = 0x8, scoped, tag = 'scoped memory for tpu_custom_call.1']
    #allocation4 [shape = 's32[2]{0}', space=sflag, size = 0x8, scoped, tag = 'scoped memory for tpu_custom_call.1']
    #allocation5 [shape = 'u8[32768]{0}', space=vmem, size = 0x8000, scoped, tag = 'output window, operand 0']
    %6 = vsyncpa [#allocation3], 0
    %s7 = scalar_lea.sflag [#allocation3], 1
    %8 = vsyncpa %s7, 0
    %9 = vsyncpa [#allocation4], 0
    %s10 = scalar_lea.sflag [#allocation4], 1
    %11 = vsyncpa %s10, 0
    loop: start=0, step=1, limit=4
    $region2: #{tpu_custom_call.1} parent=1 // loop_pre_header
      _
    $region3: #{tpu_custom_call.1} parent=1 // loop_header
      %s13 = sphi 0, %s17
      %p14 = scmp.ge.s32.totalorder %s13, 4
      %s20 = sphi 0, %s32
      %s21 = sphi 0, %s28
      %s22 = sphi 0, %s20
      %s23 = sphi 0, %s21
      %s24 = sphi 0, %s22
      %s25 = sphi 0, %s23
      %s37 = sphi 0, %s39
      %s40 = sphi 0, %s37
      %s41 = sphi 0, %s40
      %s57 = sphi 0, %s41
      %s65 = sphi 0, %s67
      %s68 = sphi 0, %s65
      %s69 = sphi 0, %s68
      %s85 = sphi 0, %s69
    $region4: #{tpu_custom_call.1} parent=1 // loop_header_branch
      %16 = sbr.rel (%p14) target = $region8
    $region5: #{tpu_custom_call.1} parent=1 // loop_body
      %s18 = ssub.s32 %s13, 1
      %s19 = ssub.s32 %s13, 2
      %s26 = sadd.s32 1, %s21
      %p27 = scmp.ge.s32.totalorder %s26, 1
      %s28 = scalar_select %p27, 0, %s26
      %s29 = sadd.s32 1, %s20
      %s30 = scalar_select %p27, %s29, %s20
      %p31 = scmp.ge.s32.totalorder %s30, 2
      %s32 = scalar_select %p31, 0, %s30
      %s33 = ssub.s32 %s20, %s32
      %s34 = ssub.s32 %s21, %s28
      %s35 = sor.u32 %s33, %s34
      %p36 = scmp.eq.s32.totalorder %s35, 0
      %s38 = sadd.s32 %s37, 1
      %s39 = scalar_select %p36, %s37, %s38
      %p42 = pneg %p36
      %p43 = scmp.eq.s32.totalorder %s13, 1
      %p44 = por %p42, %p43
      %p45 = scmp.ne.s32.totalorder %s37, %s40
      %p46 = scmp.eq.s32.totalorder %s13, 0
      %p47 = por %p45, %p46
      %p48 = scmp.ne.s32.totalorder %s37, %s40
      %p49 = scmp.eq.s32.totalorder %s18, 1
      %p50 = por %p48, %p49
      %p51 = scmp.ne.s32.totalorder %s40, %s41
      %p52 = scmp.eq.s32.totalorder %s18, 0
      %p53 = por %p51, %p52
      %p54 = scmp.ne.s32.totalorder %s40, %s41
      %p55 = scmp.eq.s32.totalorder %s19, 1
      %p56 = por %p54, %p55
      %p58 = scmp.ne.s32.totalorder %s41, %s57
      %p59 = scmp.eq.s32.totalorder %s19, 0
      %p60 = por %p58, %p59
      %s61 = ssub.s32 %s20, %s32
      %s62 = ssub.s32 %s21, %s28
      %s63 = sor.u32 %s61, %s62
      %p64 = scmp.eq.s32.totalorder %s63, 0
      %s66 = sadd.s32 %s65, 1
      %s67 = scalar_select %p64, %s65, %s66
      %p70 = pneg %p64
      %p71 = scmp.eq.s32.totalorder %s13, 1
      %p72 = por %p70, %p71
      %p73 = scmp.ne.s32.totalorder %s65, %s68
      %p74 = scmp.eq.s32.totalorder %s13, 0
      %p75 = por %p73, %p74
      %p76 = scmp.ne.s32.totalorder %s65, %s68
      %p77 = scmp.eq.s32.totalorder %s18, 1
      %p78 = por %p76, %p77
      %p79 = scmp.ne.s32.totalorder %s68, %s69
      %p80 = scmp.eq.s32.totalorder %s18, 0
      %p81 = por %p79, %p80
      %p82 = scmp.ne.s32.totalorder %s68, %s69
      %p83 = scmp.eq.s32.totalorder %s19, 1
      %p84 = por %p82, %p83
      %p86 = scmp.ne.s32.totalorder %s69, %s85
      %p87 = scmp.eq.s32.totalorder %s19, 0
      %p88 = por %p86, %p87
      %p89 = scmp.le.s32.totalorder 1, %s13
      %p90 = scmp.lt.s32.totalorder %s13, 3
      %p91 = pnand %p89, %p90
      %p92 = pneg %p91
      // Predicated region
      $region9: #{tpu_custom_call.1} parent=5 // pred_check
        _
      $region10: #{tpu_custom_call.1} parent=5 // pred_check_branch
        %94 = sbr.rel (%p91) target = $region12
      $region11: #{tpu_custom_call.1} parent=5 // pred_region
        %s95 = ssub.s32 %s13, 1
      $region12: #{tpu_custom_call.1} parent=5 // pred_fallthru
        _
      %p96 = scmp.lt.s32.totalorder %s13, 2
      // Predicated region
      $region13: #{tpu_custom_call.1} parent=5 // pred_check
        %p97 = pneg %p96
      $region14: #{tpu_custom_call.1} parent=5 // pred_check_branch
        %99 = sbr.rel (%p97) target = $region16
      $region15: #{tpu_custom_call.1} parent=5 // pred_region
        // Predicated region
        $region17: #{tpu_custom_call.1} parent=15 // pred_check
          %p100 = pneg %p47
        $region18: #{tpu_custom_call.1} parent=15 // pred_check_branch
          %102 = sbr.rel (%p100) target = $region20
        $region19: #{tpu_custom_call.1} parent=15 // pred_region
          %s103 = sand.u32 %s37, 1
          %s104 = scalar_lea.sflag [#allocation3], %s103
          %s105 = sand.u32 %s37, 1
          %s106 = smul.addr %s105, 64
          %s107 = scalar_lea.vmem [#allocation2], %s106
          %s108 = smul.u32 4, %s21
          %s110 = ssub.s32 1024, 1024
          %111 = vsyncadd %s104, %s110
          %s112 = smul.addr %s108, 2
          %s113 = smul.addr %s20, 8
          %s114 = sadd.s32 %s112, %s113
          %s115 = smul.addr %s114, 128
          %s116 = scalar_lea.hbm %s0, %s115
          %s117 = sshll.u32 %s107, 4
          %s118 = int_to_ptr.vmem [resolvable:$true] %s117
          %123 = dma.hbm_to_vmem [thread:$0]  %s116, 1024, %s118, %s104, 128, 128, 8
        $region20: #{tpu_custom_call.1} parent=15 // pred_fallthru
          _
      $region16: #{tpu_custom_call.1} parent=5 // pred_fallthru
        _
      %p124 = scmp.le.s32.totalorder 1, %s13
      %p125 = scmp.lt.s32.totalorder %s13, 3
      %p126 = pnand %p124, %p125
      %p127 = pneg %p126
      // Predicated region
      $region21: #{tpu_custom_call.1} parent=5 // pred_check
        _
      $region22: #{tpu_custom_call.1} parent=5 // pred_check_branch
        %129 = sbr.rel (%p126) target = $region24
      $region23: #{tpu_custom_call.1} parent=5 // pred_region
        %s130 = ssub.s32 %s13, 1
        %s131 = sand.u32 %s40, 1
        %s132 = scalar_lea.sflag [#allocation3], %s131
        %s133 = sand.u32 %s40, 1
        %s134 = smul.addr %s133, 64
        %s135 = scalar_lea.vmem [#allocation2], %s134
        // Predicated region
        $region25: #{tpu_custom_call.1} parent=23 // pred_check
          %p136 = pneg %p53
        $region26: #{tpu_custom_call.1} parent=23 // pred_check_branch
          %138 = sbr.rel (%p136) target = $region28
        $region27: #{tpu_custom_call.1} parent=23 // pred_region
          %139 = dma.done %s132, 1024
        $region28: #{tpu_custom_call.1} parent=23 // pred_fallthru
          _
        %s140 = sand.u32 %s40, 1
        %s141 = scalar_lea.sflag [#allocation3], %s140
        %s142 = sand.u32 %s40, 1
        %s143 = smul.addr %s142, 64
        %s144 = scalar_lea.vmem [#allocation2], %s143
        %p145 = pneg %p53
        %p146 = pneg %p50
        %p147 = pneg %p81
        %p148 = pneg %p78
        %s149 = sand.u32 %s68, 1
        %s150 = scalar_lea.sflag [#allocation4], %s149
        %s151 = sand.u32 %s68, 1
        %s152 = smul.addr %s151, 32
        %s153 = scalar_lea.vmem [#allocation5], %s152
        %s154 = smul.u32 4, %s23
        %s155 = smul.u32 4, %s23
        %v156 = vlaneseq
        %v157 = vand.u32 %v156, 127
        %v158 = vlaneseq
        %v159 = vshrl.u32 %v158, 7
        %v160 = vmul.u32 %v159, 2
        %v161 = vsub.s32 %v160, 2
        %vm162 = vcmp.eq.s32.totalorder %v157, %v161
        %vm163 = vcmp.eq.s32.totalorder %v157, %v160
        %vm164 = vmor %vm162, %vm163
        %v165 = vadd.s32 %v160, 4
        %v166 = vsub.s32 %v165, 2
        %vm167 = vcmp.eq.s32.totalorder %v157, %v166
        %vm168 = vmor %vm164, %vm167
        %v169 = vsel %vm168, 1, 0
        %v170 = vcvt.s32.f32 %v169
        %v171 = vadd.s32 %v159, 8
        %v172 = vmul.u32 %v157, 2
        %v173 = vsub.s32 %v172, 2
        %vm174 = vcmp.eq.s32.totalorder %v159, %v173
        %vm175 = vcmp.eq.s32.totalorder %v171, %v173
        %vm176 = vcmp.eq.s32.totalorder %v159, %v172
        %vm177 = vcmp.eq.s32.totalorder %v171, %v172
        %vm178 = vmor %vm174, %vm176
        %vm179 = vmor %vm175, %vm177
        %v180 = vadd.s32 %v172, 4
        %v181 = vsub.s32 %v180, 2
        %vm182 = vcmp.eq.s32.totalorder %v159, %v181
        %vm183 = vcmp.eq.s32.totalorder %v171, %v181
        %vm184 = vmor %vm178, %vm182
        %vm185 = vmor %vm179, %vm183
        %v186 = vsel %vm184, 1, 0
        %v187 = vsel %vm185, 1, 0
        %v188 = vcvt.s32.f32 %v186
        %v189 = vcvt.s32.f32 %v187
        %v190 = vld [vmem:[%s135] sm:$0xff]
        %v191 = vld [vmem:[%s135 + $0x8] sm:$0xff]
        %vm192 = vcmask 130048
        %v194 = vsel %vm192, %v190, 0
        %v197 = vsel %vm192, %v191, 0
        %199 = vmatprep.subr.mxu0 0.0
        %200 = vmatpush1.msra.mxu0 %v188
        %201 = vmatprep.subr.mxu0 0.0
        %202 = vmatpush1.msra.mxu0 %v189
        %203 = vmatprep.subr.mxu0 0.0
        %204 = vmatpush1.msra.mxu0 0.0
        %205 = vmatprep.subr.mxu0 0.0
        %206 = vmatpush1.msra.mxu0 0.0
        %207 = vmatprep.subr.mxu0 0.0
        %208 = vmatpush1.msra.mxu0 0.0
        %209 = vmatprep.subr.mxu0 0.0
        %210 = vmatpush1.msra.mxu0 0.0
        %211 = vmatprep.subr.mxu0 0.0
        %212 = vmatpush1.msra.mxu0 0.0
        %213 = vmatprep.subr.mxu0 0.0
        %214 = vmatpush1.msra.mxu0 0.0
        %215 = vmatprep.subr.mxu0 0.0
        %216 = vmatpush1.msra.mxu0 0.0
        %217 = vmatprep.subr.mxu0 0.0
        %218 = vmatpush1.msra.mxu0 0.0
        %219 = vmatprep.subr.mxu0 0.0
        %220 = vmatpush1.msra.mxu0 0.0
        %221 = vmatprep.subr.mxu0 0.0
        %222 = vmatpush1.msra.mxu0 0.0
        %223 = vmatprep.subr.mxu0 0.0
        %224 = vmatpush1.msra.mxu0 0.0
        %225 = vmatprep.subr.mxu0 0.0
        %226 = vmatpush1.msra.mxu0 0.0
        %227 = vmatprep.subr.mxu0 0.0
        %228 = vmatpush1.msra.mxu0 0.0
        %229 = vmatprep.subr.mxu0 0.0
        %230 = vmatpush1.msra.mxu0 0.0
        %231 = vmatprep.subr.mxu0 0.0
        %232 = vmatpush1.msra.mxu0 0.0
        %233 = vmatprep.subr.mxu0 0.0
        %234 = vmatpush1.msra.mxu0 0.0
        %235 = vmatprep.subr.mxu0 0.0
        %236 = vmatpush1.msra.mxu0 0.0
        %237 = vmatprep.subr.mxu0 0.0
        %238 = vmatpush1.msra.mxu0 0.0
        %239 = vmatprep.subr.mxu0 0.0
        %240 = vmatpush1.msra.mxu0 0.0
        %241 = vmatprep.subr.mxu0 0.0
        %242 = vmatpush1.msra.mxu0 0.0
        %243 = vmatprep.subr.mxu0 0.0
        %244 = vmatpush1.msra.mxu0 0.0
        %245 = vmatprep.subr.mxu0 0.0
        %246 = vmatpush1.msra.mxu0 0.0
        %247 = vmatprep.subr.mxu0 0.0
        %248 = vmatpush1.msra.mxu0 0.0
        %249 = vmatprep.subr.mxu0 0.0
        %250 = vmatpush1.msra.mxu0 0.0
        %251 = vmatprep.subr.mxu0 0.0
        %252 = vmatpush1.msra.mxu0 0.0
        %253 = vmatprep.subr.mxu0 0.0
        %254 = vmatpush1.msra.mxu0 0.0
        %255 = vmatprep.subr.mxu0 0.0
        %256 = vmatpush1.msra.mxu0 0.0
        %257 = vmatprep.subr.mxu0 0.0
        %258 = vmatpush1.msra.mxu0 0.0
        %259 = vmatprep.subr.mxu0 0.0
        %260 = vmatpush1.msra.mxu0 0.0
        %261 = vmatprep.subr.mxu0 0.0
        %262 = vmatpush1.msra.mxu0 0.0
        %263 = vmatprep.mubr.f32.mxu0 0.0
        %264 = vmatmul.mubr.f32.gmra.mrb[0].mxu0 %v194
        %v265 = vpop.f32.mrb[0].mxu0
        %v266 = vadd.f32 0.0, %v265
        %v267 = vpop.f32.mrb[0].mxu0
        %268 = vmatprep.mubr.f32.mxu0 0.0
        %269 = vmatmul.mubr.f32.gmra.mrb[0].mxu0 %v197
        %v270 = vpop.f32.mrb[0].mxu0
        %v271 = vadd.f32 0.0, %v270
        %v272 = vpop.f32.mrb[0].mxu0
        %273 = vdwg.mxu0
        %v275 = vsel %vm192, %v170, 0
        %277 = vmatprep.subr.mxu0 0.0
        %278 = vmatpush1.msra.mxu0 %v266
        %279 = vmatprep.subr.mxu0 0.0
        %280 = vmatpush1.msra.mxu0 %v271
        %281 = vmatprep.subr.mxu0 0.0
        %282 = vmatpush1.msra.mxu0 0.0
        %283 = vmatprep.subr.mxu0 0.0
        %284 = vmatpush1.msra.mxu0 0.0
        %285 = vmatprep.subr.mxu0 0.0
        %286 = vmatpush1.msra.mxu0 0.0
        %287 = vmatprep.subr.mxu0 0.0
        %288 = vmatpush1.msra.mxu0 0.0
        %289 = vmatprep.subr.mxu0 0.0
        %290 = vmatpush1.msra.mxu0 0.0
        %291 = vmatprep.subr.mxu0 0.0
        %292 = vmatpush1.msra.mxu0 0.0
        %293 = vmatprep.subr.mxu0 0.0
        %294 = vmatpush1.msra.mxu0 0.0
        %295 = vmatprep.subr.mxu0 0.0
        %296 = vmatpush1.msra.mxu0 0.0
        %297 = vmatprep.subr.mxu0 0.0
        %298 = vmatpush1.msra.mxu0 0.0
        %299 = vmatprep.subr.mxu0 0.0
        %300 = vmatpush1.msra.mxu0 0.0
        %301 = vmatprep.subr.mxu0 0.0
        %302 = vmatpush1.msra.mxu0 0.0
        %303 = vmatprep.subr.mxu0 0.0
        %304 = vmatpush1.msra.mxu0 0.0
        %305 = vmatprep.subr.mxu0 0.0
        %306 = vmatpush1.msra.mxu0 0.0
        %307 = vmatprep.subr.mxu0 0.0
        %308 = vmatpush1.msra.mxu0 0.0
        %309 = vmatprep.subr.mxu0 0.0
        %310 = vmatpush1.msra.mxu0 0.0
        %311 = vmatprep.subr.mxu0 0.0
        %312 = vmatpush1.msra.mxu0 0.0
        %313 = vmatprep.subr.mxu0 0.0
        %314 = vmatpush1.msra.mxu0 0.0
        %315 = vmatprep.subr.mxu0 0.0
        %316 = vmatpush1.msra.mxu0 0.0
        %317 = vmatprep.subr.mxu0 0.0
        %318 = vmatpush1.msra.mxu0 0.0
        %319 = vmatprep.subr.mxu0 0.0
        %320 = vmatpush1.msra.mxu0 0.0
        %321 = vmatprep.subr.mxu0 0.0
        %322 = vmatpush1.msra.mxu0 0.0
        %323 = vmatprep.subr.mxu0 0.0
        %324 = vmatpush1.msra.mxu0 0.0
        %325 = vmatprep.subr.mxu0 0.0
        %326 = vmatpush1.msra.mxu0 0.0
        %327 = vmatprep.subr.mxu0 0.0
        %328 = vmatpush1.msra.mxu0 0.0
        %329 = vmatprep.subr.mxu0 0.0
        %330 = vmatpush1.msra.mxu0 0.0
        %331 = vmatprep.subr.mxu0 0.0
        %332 = vmatpush1.msra.mxu0 0.0
        %333 = vmatprep.subr.mxu0 0.0
        %334 = vmatpush1.msra.mxu0 0.0
        %335 = vmatprep.subr.mxu0 0.0
        %336 = vmatpush1.msra.mxu0 0.0
        %337 = vmatprep.subr.mxu0 0.0
        %338 = vmatpush1.msra.mxu0 0.0
        %339 = vmatprep.subr.mxu0 0.0
        %340 = vmatpush1.msra.mxu0 0.0
        %341 = vmatprep.mubr.f32.mxu0 0.0
        %342 = vmatmul.mubr.f32.gmra.mrb[0].mxu0 %v275
        %v343 = vpop.f32.mrb[0].mxu0
        %v344 = vadd.f32 0.0, %v343
        %v345 = vpop.f32.mrb[0].mxu0
        %346 = vdwg.mxu0
        %v347 = vmul.f32 %v344, 0.11111111
        %vm348 = vcmask 64512
        %349 = vst.msk [vmem:[%s153] sm:$0xff] %vm348, %v347
        %s350 = scalar_lea.vmem %s135, 16 [#allocation2]
        %v351 = vld [vmem:[%s350] sm:$0xff]
        %v352 = vld [vmem:[%s350 + $0x8] sm:$0xff]
        %v354 = vsel %vm192, %v351, 0
        %v357 = vsel %vm192, %v352, 0
        %359 = vmatprep.subr.mxu0 0.0
        %360 = vmatpush1.msra.mxu0 %v188
        %361 = vmatprep.subr.mxu0 0.0
        %362 = vmatpush1.msra.mxu0 %v189
        %363 = vmatprep.subr.mxu0 0.0
        %364 = vmatpush1.msra.mxu0 0.0
        %365 = vmatprep.subr.mxu0 0.0
        %366 = vmatpush1.msra.mxu0 0.0
        %367 = vmatprep.subr.mxu0 0.0
        %368 = vmatpush1.msra.mxu0 0.0
        %369 = vmatprep.subr.mxu0 0.0
        %370 = vmatpush1.msra.mxu0 0.0
        %371 = vmatprep.subr.mxu0 0.0
        %372 = vmatpush1.msra.mxu0 0.0
        %373 = vmatprep.subr.mxu0 0.0
        %374 = vmatpush1.msra.mxu0 0.0
        %375 = vmatprep.subr.mxu0 0.0
        %376 = vmatpush1.msra.mxu0 0.0
        %377 = vmatprep.subr.mxu0 0.0
        %378 = vmatpush1.msra.mxu0 0.0
        %379 = vmatprep.subr.mxu0 0.0
        %380 = vmatpush1.msra.mxu0 0.0
        %381 = vmatprep.subr.mxu0 0.0
        %382 = vmatpush1.msra.mxu0 0.0
        %383 = vmatprep.subr.mxu0 0.0
        %384 = vmatpush1.msra.mxu0 0.0
        %385 = vmatprep.subr.mxu0 0.0
        %386 = vmatpush1.msra.mxu0 0.0
        %387 = vmatprep.subr.mxu0 0.0
        %388 = vmatpush1.msra.mxu0 0.0
        %389 = vmatprep.subr.mxu0 0.0
        %390 = vmatpush1.msra.mxu0 0.0
        %391 = vmatprep.subr.mxu0 0.0
        %392 = vmatpush1.msra.mxu0 0.0
        %393 = vmatprep.subr.mxu0 0.0
        %394 = vmatpush1.msra.mxu0 0.0
        %395 = vmatprep.subr.mxu0 0.0
        %396 = vmatpush1.msra.mxu0 0.0
        %397 = vmatprep.subr.mxu0 0.0
        %398 = vmatpush1.msra.mxu0 0.0
        %399 = vmatprep.subr.mxu0 0.0
        %400 = vmatpush1.msra.mxu0 0.0
        %401 = vmatprep.subr.mxu0 0.0
        %402 = vmatpush1.msra.mxu0 0.0
        %403 = vmatprep.subr.mxu0 0.0
        %404 = vmatpush1.msra.mxu0 0.0
        %405 = vmatprep.subr.mxu0 0.0
        %406 = vmatpush1.msra.mxu0 0.0
        %407 = vmatprep.subr.mxu0 0.0
        %408 = vmatpush1.msra.mxu0 0.0
        %409 = vmatprep.subr.mxu0 0.0
        %410 = vmatpush1.msra.mxu0 0.0
        %411 = vmatprep.subr.mxu0 0.0
        %412 = vmatpush1.msra.mxu0 0.0
        %413 = vmatprep.subr.mxu0 0.0
        %414 = vmatpush1.msra.mxu0 0.0
        %415 = vmatprep.subr.mxu0 0.0
        %416 = vmatpush1.msra.mxu0 0.0
        %417 = vmatprep.subr.mxu0 0.0
        %418 = vmatpush1.msra.mxu0 0.0
        %419 = vmatprep.subr.mxu0 0.0
        %420 = vmatpush1.msra.mxu0 0.0
        %421 = vmatprep.subr.mxu0 0.0
        %422 = vmatpush1.msra.mxu0 0.0
        %423 = vmatprep.mubr.f32.mxu0 0.0
        %424 = vmatmul.mubr.f32.gmra.mrb[0].mxu0 %v354
        %v425 = vpop.f32.mrb[0].mxu0
        %v426 = vadd.f32 0.0, %v425
        %v427 = vpop.f32.mrb[0].mxu0
        %428 = vmatprep.mubr.f32.mxu0 0.0
        %429 = vmatmul.mubr.f32.gmra.mrb[0].mxu0 %v357
        %v430 = vpop.f32.mrb[0].mxu0
        %v431 = vadd.f32 0.0, %v430
        %v432 = vpop.f32.mrb[0].mxu0
        %433 = vdwg.mxu0
        %434 = vmatprep.subr.mxu0 0.0
        %435 = vmatpush1.msra.mxu0 %v426
        %436 = vmatprep.subr.mxu0 0.0
        %437 = vmatpush1.msra.mxu0 %v431
        %438 = vmatprep.subr.mxu0 0.0
        %439 = vmatpush1.msra.mxu0 0.0
        %440 = vmatprep.subr.mxu0 0.0
        %441 = vmatpush1.msra.mxu0 0.0
        %442 = vmatprep.subr.mxu0 0.0
        %443 = vmatpush1.msra.mxu0 0.0
        %444 = vmatprep.subr.mxu0 0.0
        %445 = vmatpush1.msra.mxu0 0.0
        %446 = vmatprep.subr.mxu0 0.0
        %447 = vmatpush1.msra.mxu0 0.0
        %448 = vmatprep.subr.mxu0 0.0
        %449 = vmatpush1.msra.mxu0 0.0
        %450 = vmatprep.subr.mxu0 0.0
        %451 = vmatpush1.msra.mxu0 0.0
        %452 = vmatprep.subr.mxu0 0.0
        %453 = vmatpush1.msra.mxu0 0.0
        %454 = vmatprep.subr.mxu0 0.0
        %455 = vmatpush1.msra.mxu0 0.0
        %456 = vmatprep.subr.mxu0 0.0
        %457 = vmatpush1.msra.mxu0 0.0
        %458 = vmatprep.subr.mxu0 0.0
        %459 = vmatpush1.msra.mxu0 0.0
        %460 = vmatprep.subr.mxu0 0.0
        %461 = vmatpush1.msra.mxu0 0.0
        %462 = vmatprep.subr.mxu0 0.0
        %463 = vmatpush1.msra.mxu0 0.0
        %464 = vmatprep.subr.mxu0 0.0
        %465 = vmatpush1.msra.mxu0 0.0
        %466 = vmatprep.subr.mxu0 0.0
        %467 = vmatpush1.msra.mxu0 0.0
        %468 = vmatprep.subr.mxu0 0.0
        %469 = vmatpush1.msra.mxu0 0.0
        %470 = vmatprep.subr.mxu0 0.0
        %471 = vmatpush1.msra.mxu0 0.0
        %472 = vmatprep.subr.mxu0 0.0
        %473 = vmatpush1.msra.mxu0 0.0
        %474 = vmatprep.subr.mxu0 0.0
        %475 = vmatpush1.msra.mxu0 0.0
        %476 = vmatprep.subr.mxu0 0.0
        %477 = vmatpush1.msra.mxu0 0.0
        %478 = vmatprep.subr.mxu0 0.0
        %479 = vmatpush1.msra.mxu0 0.0
        %480 = vmatprep.subr.mxu0 0.0
        %481 = vmatpush1.msra.mxu0 0.0
        %482 = vmatprep.subr.mxu0 0.0
        %483 = vmatpush1.msra.mxu0 0.0
        %484 = vmatprep.subr.mxu0 0.0
        %485 = vmatpush1.msra.mxu0 0.0
        %486 = vmatprep.subr.mxu0 0.0
        %487 = vmatpush1.msra.mxu0 0.0
        %488 = vmatprep.subr.mxu0 0.0
        %489 = vmatpush1.msra.mxu0 0.0
        %490 = vmatprep.subr.mxu0 0.0
        %491 = vmatpush1.msra.mxu0 0.0
        %492 = vmatprep.subr.mxu0 0.0
        %493 = vmatpush1.msra.mxu0 0.0
        %494 = vmatprep.subr.mxu0 0.0
        %495 = vmatpush1.msra.mxu0 0.0
        %496 = vmatprep.subr.mxu0 0.0
        %497 = vmatpush1.msra.mxu0 0.0
        %498 = vmatprep.mubr.f32.mxu0 0.0
        %499 = vmatmul.mubr.f32.gmra.mrb[0].mxu0 %v275
        %v500 = vpop.f32.mrb[0].mxu0
        %v501 = vadd.f32 0.0, %v500
        %v502 = vpop.f32.mrb[0].mxu0
        %503 = vdwg.mxu0
        %v504 = vmul.f32 %v501, 0.11111111
        %s505 = scalar_lea.vmem %s153, 8 [#allocation5]
        %506 = vst.msk [vmem:[%s505] sm:$0xff] %vm348, %v504
        %s507 = scalar_lea.vmem %s135, 32 [#allocation2]
        %v508 = vld [vmem:[%s507] sm:$0xff]
        %v509 = vld [vmem:[%s507 + $0x8] sm:$0xff]
        %v511 = vsel %vm192, %v508, 0
        %v514 = vsel %vm192, %v509, 0
        %516 = vmatprep.subr.mxu0 0.0
        %517 = vmatpush1.msra.mxu0 %v188
        %518 = vmatprep.subr.mxu0 0.0
        %519 = vmatpush1.msra.mxu0 %v189
        %520 = vmatprep.subr.mxu0 0.0
        %521 = vmatpush1.msra.mxu0 0.0
        %522 = vmatprep.subr.mxu0 0.0
        %523 = vmatpush1.msra.mxu0 0.0
        %524 = vmatprep.subr.mxu0 0.0
        %525 = vmatpush1.msra.mxu0 0.0
        %526 = vmatprep.subr.mxu0 0.0
        %527 = vmatpush1.msra.mxu0 0.0
        %528 = vmatprep.subr.mxu0 0.0
        %529 = vmatpush1.msra.mxu0 0.0
        %530 = vmatprep.subr.mxu0 0.0
        %531 = vmatpush1.msra.mxu0 0.0
        %532 = vmatprep.subr.mxu0 0.0
        %533 = vmatpush1.msra.mxu0 0.0
        %534 = vmatprep.subr.mxu0 0.0
        %535 = vmatpush1.msra.mxu0 0.0
        %536 = vmatprep.subr.mxu0 0.0
        %537 = vmatpush1.msra.mxu0 0.0
        %538 = vmatprep.subr.mxu0 0.0
        %539 = vmatpush1.msra.mxu0 0.0
        %540 = vmatprep.subr.mxu0 0.0
        %541 = vmatpush1.msra.mxu0 0.0
        %542 = vmatprep.subr.mxu0 0.0
        %543 = vmatpush1.msra.mxu0 0.0
        %544 = vmatprep.subr.mxu0 0.0
        %545 = vmatpush1.msra.mxu0 0.0
        %546 = vmatprep.subr.mxu0 0.0
        %547 = vmatpush1.msra.mxu0 0.0
        %548 = vmatprep.subr.mxu0 0.0
        %549 = vmatpush1.msra.mxu0 0.0
        %550 = vmatprep.subr.mxu0 0.0
        %551 = vmatpush1.msra.mxu0 0.0
        %552 = vmatprep.subr.mxu0 0.0
        %553 = vmatpush1.msra.mxu0 0.0
        %554 = vmatprep.subr.mxu0 0.0
        %555 = vmatpush1.msra.mxu0 0.0
        %556 = vmatprep.subr.mxu0 0.0
        %557 = vmatpush1.msra.mxu0 0.0
        %558 = vmatprep.subr.mxu0 0.0
        %559 = vmatpush1.msra.mxu0 0.0
        %560 = vmatprep.subr.mxu0 0.0
        %561 = vmatpush1.msra.mxu0 0.0
        %562 = vmatprep.subr.mxu0 0.0
        %563 = vmatpush1.msra.mxu0 0.0
        %564 = vmatprep.subr.mxu0 0.0
        %565 = vmatpush1.msra.mxu0 0.0
        %566 = vmatprep.subr.mxu0 0.0
        %567 = vmatpush1.msra.mxu0 0.0
        %568 = vmatprep.subr.mxu0 0.0
        %569 = vmatpush1.msra.mxu0 0.0
        %570 = vmatprep.subr.mxu0 0.0
        %571 = vmatpush1.msra.mxu0 0.0
        %572 = vmatprep.subr.mxu0 0.0
        %573 = vmatpush1.msra.mxu0 0.0
        %574 = vmatprep.subr.mxu0 0.0
        %575 = vmatpush1.msra.mxu0 0.0
        %576 = vmatprep.subr.mxu0 0.0
        %577 = vmatpush1.msra.mxu0 0.0
        %578 = vmatprep.subr.mxu0 0.0
        %579 = vmatpush1.msra.mxu0 0.0
        %580 = vmatprep.mubr.f32.mxu0 0.0
        %581 = vmatmul.mubr.f32.gmra.mrb[0].mxu0 %v511
        %v582 = vpop.f32.mrb[0].mxu0
        %v583 = vadd.f32 0.0, %v582
        %v584 = vpop.f32.mrb[0].mxu0
        %585 = vmatprep.mubr.f32.mxu0 0.0
        %586 = vmatmul.mubr.f32.gmra.mrb[0].mxu0 %v514
        %v587 = vpop.f32.mrb[0].mxu0
        %v588 = vadd.f32 0.0, %v587
        %v589 = vpop.f32.mrb[0].mxu0
        %590 = vdwg.mxu0
        %591 = vmatprep.subr.mxu0 0.0
        %592 = vmatpush1.msra.mxu0 %v583
        %593 = vmatprep.subr.mxu0 0.0
        %594 = vmatpush1.msra.mxu0 %v588
        %595 = vmatprep.subr.mxu0 0.0
        %596 = vmatpush1.msra.mxu0 0.0
        %597 = vmatprep.subr.mxu0 0.0
        %598 = vmatpush1.msra.mxu0 0.0
        %599 = vmatprep.subr.mxu0 0.0
        %600 = vmatpush1.msra.mxu0 0.0
        %601 = vmatprep.subr.mxu0 0.0
        %602 = vmatpush1.msra.mxu0 0.0
        %603 = vmatprep.subr.mxu0 0.0
        %604 = vmatpush1.msra.mxu0 0.0
        %605 = vmatprep.subr.mxu0 0.0
        %606 = vmatpush1.msra.mxu0 0.0
        %607 = vmatprep.subr.mxu0 0.0
        %608 = vmatpush1.msra.mxu0 0.0
        %609 = vmatprep.subr.mxu0 0.0
        %610 = vmatpush1.msra.mxu0 0.0
        %611 = vmatprep.subr.mxu0 0.0
        %612 = vmatpush1.msra.mxu0 0.0
        %613 = vmatprep.subr.mxu0 0.0
        %614 = vmatpush1.msra.mxu0 0.0
        %615 = vmatprep.subr.mxu0 0.0
        %616 = vmatpush1.msra.mxu0 0.0
        %617 = vmatprep.subr.mxu0 0.0
        %618 = vmatpush1.msra.mxu0 0.0
        %619 = vmatprep.subr.mxu0 0.0
        %620 = vmatpush1.msra.mxu0 0.0
        %621 = vmatprep.subr.mxu0 0.0
        %622 = vmatpush1.msra.mxu0 0.0
        %623 = vmatprep.subr.mxu0 0.0
        %624 = vmatpush1.msra.mxu0 0.0
        %625 = vmatprep.subr.mxu0 0.0
        %626 = vmatpush1.msra.mxu0 0.0
        %627 = vmatprep.subr.mxu0 0.0
        %628 = vmatpush1.msra.mxu0 0.0
        %629 = vmatprep.subr.mxu0 0.0
        %630 = vmatpush1.msra.mxu0 0.0
        %631 = vmatprep.subr.mxu0 0.0
        %632 = vmatpush1.msra.mxu0 0.0
        %633 = vmatprep.subr.mxu0 0.0
        %634 = vmatpush1.msra.mxu0 0.0
        %635 = vmatprep.subr.mxu0 0.0
        %636 = vmatpush1.msra.mxu0 0.0
        %637 = vmatprep.subr.mxu0 0.0
        %638 = vmatpush1.msra.mxu0 0.0
        %639 = vmatprep.subr.mxu0 0.0
        %640 = vmatpush1.msra.mxu0 0.0
        %641 = vmatprep.subr.mxu0 0.0
        %642 = vmatpush1.msra.mxu0 0.0
        %643 = vmatprep.subr.mxu0 0.0
        %644 = vmatpush1.msra.mxu0 0.0
        %645 = vmatprep.subr.mxu0 0.0
        %646 = vmatpush1.msra.mxu0 0.0
        %647 = vmatprep.subr.mxu0 0.0
        %648 = vmatpush1.msra.mxu0 0.0
        %649 = vmatprep.subr.mxu0 0.0
        %650 = vmatpush1.msra.mxu0 0.0
        %651 = vmatprep.subr.mxu0 0.0
        %652 = vmatpush1.msra.mxu0 0.0
        %653 = vmatprep.subr.mxu0 0.0
        %654 = vmatpush1.msra.mxu0 0.0
        %655 = vmatprep.mubr.f32.mxu0 0.0
        %656 = vmatmul.mubr.f32.gmra.mrb[0].mxu0 %v275
        %v657 = vpop.f32.mrb[0].mxu0
        %v658 = vadd.f32 0.0, %v657
        %v659 = vpop.f32.mrb[0].mxu0
        %660 = vdwg.mxu0
        %v661 = vmul.f32 %v658, 0.11111111
        %s662 = scalar_lea.vmem %s153, 16 [#allocation5]
        %663 = vst.msk [vmem:[%s662] sm:$0xff] %vm348, %v661
        %s664 = scalar_lea.vmem %s135, 48 [#allocation2]
        %v665 = vld [vmem:[%s664] sm:$0xff]
        %v666 = vld [vmem:[%s664 + $0x8] sm:$0xff]
        %v668 = vsel %vm192, %v665, 0
        %v671 = vsel %vm192, %v666, 0
        %673 = vmatprep.subr.mxu0 0.0
        %674 = vmatpush1.msra.mxu0 %v188
        %675 = vmatprep.subr.mxu0 0.0
        %676 = vmatpush1.msra.mxu0 %v189
        %677 = vmatprep.subr.mxu0 0.0
        %678 = vmatpush1.msra.mxu0 0.0
        %679 = vmatprep.subr.mxu0 0.0
        %680 = vmatpush1.msra.mxu0 0.0
        %681 = vmatprep.subr.mxu0 0.0
        %682 = vmatpush1.msra.mxu0 0.0
        %683 = vmatprep.subr.mxu0 0.0
        %684 = vmatpush1.msra.mxu0 0.0
        %685 = vmatprep.subr.mxu0 0.0
        %686 = vmatpush1.msra.mxu0 0.0
        %687 = vmatprep.subr.mxu0 0.0
        %688 = vmatpush1.msra.mxu0 0.0
        %689 = vmatprep.subr.mxu0 0.0
        %690 = vmatpush1.msra.mxu0 0.0
        %691 = vmatprep.subr.mxu0 0.0
        %692 = vmatpush1.msra.mxu0 0.0
        %693 = vmatprep.subr.mxu0 0.0
        %694 = vmatpush1.msra.mxu0 0.0
        %695 = vmatprep.subr.mxu0 0.0
        %696 = vmatpush1.msra.mxu0 0.0
        %697 = vmatprep.subr.mxu0 0.0
        %698 = vmatpush1.msra.mxu0 0.0
        %699 = vmatprep.subr.mxu0 0.0
        %700 = vmatpush1.msra.mxu0 0.0
        %701 = vmatprep.subr.mxu0 0.0
        %702 = vmatpush1.msra.mxu0 0.0
        %703 = vmatprep.subr.mxu0 0.0
        %704 = vmatpush1.msra.mxu0 0.0
        %705 = vmatprep.subr.mxu0 0.0
        %706 = vmatpush1.msra.mxu0 0.0
        %707 = vmatprep.subr.mxu0 0.0
        %708 = vmatpush1.msra.mxu0 0.0
        %709 = vmatprep.subr.mxu0 0.0
        %710 = vmatpush1.msra.mxu0 0.0
        %711 = vmatprep.subr.mxu0 0.0
        %712 = vmatpush1.msra.mxu0 0.0
        %713 = vmatprep.subr.mxu0 0.0
        %714 = vmatpush1.msra.mxu0 0.0
        %715 = vmatprep.subr.mxu0 0.0
        %716 = vmatpush1.msra.mxu0 0.0
        %717 = vmatprep.subr.mxu0 0.0
        %718 = vmatpush1.msra.mxu0 0.0
        %719 = vmatprep.subr.mxu0 0.0
        %720 = vmatpush1.msra.mxu0 0.0
        %721 = vmatprep.subr.mxu0 0.0
        %722 = vmatpush1.msra.mxu0 0.0
        %723 = vmatprep.subr.mxu0 0.0
        %724 = vmatpush1.msra.mxu0 0.0
        %725 = vmatprep.subr.mxu0 0.0
        %726 = vmatpush1.msra.mxu0 0.0
        %727 = vmatprep.subr.mxu0 0.0
        %728 = vmatpush1.msra.mxu0 0.0
        %729 = vmatprep.subr.mxu0 0.0
        %730 = vmatpush1.msra.mxu0 0.0
        %731 = vmatprep.subr.mxu0 0.0
        %732 = vmatpush1.msra.mxu0 0.0
        %733 = vmatprep.subr.mxu0 0.0
        %734 = vmatpush1.msra.mxu0 0.0
        %735 = vmatprep.subr.mxu0 0.0
        %736 = vmatpush1.msra.mxu0 0.0
        %737 = vmatprep.mubr.f32.mxu0 0.0
        %738 = vmatmul.mubr.f32.gmra.mrb[0].mxu0 %v668
        %v739 = vpop.f32.mrb[0].mxu0
        %v740 = vadd.f32 0.0, %v739
        %v741 = vpop.f32.mrb[0].mxu0
        %742 = vmatprep.mubr.f32.mxu0 0.0
        %743 = vmatmul.mubr.f32.gmra.mrb[0].mxu0 %v671
        %v744 = vpop.f32.mrb[0].mxu0
        %v745 = vadd.f32 0.0, %v744
        %v746 = vpop.f32.mrb[0].mxu0
        %747 = vdwg.mxu0
        %748 = vmatprep.subr.mxu0 0.0
        %749 = vmatpush1.msra.mxu0 %v740
        %750 = vmatprep.subr.mxu0 0.0
        %751 = vmatpush1.msra.mxu0 %v745
        %752 = vmatprep.subr.mxu0 0.0
        %753 = vmatpush1.msra.mxu0 0.0
        %754 = vmatprep.subr.mxu0 0.0
        %755 = vmatpush1.msra.mxu0 0.0
        %756 = vmatprep.subr.mxu0 0.0
        %757 = vmatpush1.msra.mxu0 0.0
        %758 = vmatprep.subr.mxu0 0.0
        %759 = vmatpush1.msra.mxu0 0.0
        %760 = vmatprep.subr.mxu0 0.0
        %761 = vmatpush1.msra.mxu0 0.0
        %762 = vmatprep.subr.mxu0 0.0
        %763 = vmatpush1.msra.mxu0 0.0
        %764 = vmatprep.subr.mxu0 0.0
        %765 = vmatpush1.msra.mxu0 0.0
        %766 = vmatprep.subr.mxu0 0.0
        %767 = vmatpush1.msra.mxu0 0.0
        %768 = vmatprep.subr.mxu0 0.0
        %769 = vmatpush1.msra.mxu0 0.0
        %770 = vmatprep.subr.mxu0 0.0
        %771 = vmatpush1.msra.mxu0 0.0
        %772 = vmatprep.subr.mxu0 0.0
        %773 = vmatpush1.msra.mxu0 0.0
        %774 = vmatprep.subr.mxu0 0.0
        %775 = vmatpush1.msra.mxu0 0.0
        %776 = vmatprep.subr.mxu0 0.0
        %777 = vmatpush1.msra.mxu0 0.0
        %778 = vmatprep.subr.mxu0 0.0
        %779 = vmatpush1.msra.mxu0 0.0
        %780 = vmatprep.subr.mxu0 0.0
        %781 = vmatpush1.msra.mxu0 0.0
        %782 = vmatprep.subr.mxu0 0.0
        %783 = vmatpush1.msra.mxu0 0.0
        %784 = vmatprep.subr.mxu0 0.0
        %785 = vmatpush1.msra.mxu0 0.0
        %786 = vmatprep.subr.mxu0 0.0
        %787 = vmatpush1.msra.mxu0 0.0
        %788 = vmatprep.subr.mxu0 0.0
        %789 = vmatpush1.msra.mxu0 0.0
        %790 = vmatprep.subr.mxu0 0.0
        %791 = vmatpush1.msra.mxu0 0.0
        %792 = vmatprep.subr.mxu0 0.0
        %793 = vmatpush1.msra.mxu0 0.0
        %794 = vmatprep.subr.mxu0 0.0
        %795 = vmatpush1.msra.mxu0 0.0
        %796 = vmatprep.subr.mxu0 0.0
        %797 = vmatpush1.msra.mxu0 0.0
        %798 = vmatprep.subr.mxu0 0.0
        %799 = vmatpush1.msra.mxu0 0.0
        %800 = vmatprep.subr.mxu0 0.0
        %801 = vmatpush1.msra.mxu0 0.0
        %802 = vmatprep.subr.mxu0 0.0
        %803 = vmatpush1.msra.mxu0 0.0
        %804 = vmatprep.subr.mxu0 0.0
        %805 = vmatpush1.msra.mxu0 0.0
        %806 = vmatprep.subr.mxu0 0.0
        %807 = vmatpush1.msra.mxu0 0.0
        %808 = vmatprep.subr.mxu0 0.0
        %809 = vmatpush1.msra.mxu0 0.0
        %810 = vmatprep.subr.mxu0 0.0
        %811 = vmatpush1.msra.mxu0 0.0
        %812 = vmatprep.mubr.f32.mxu0 0.0
        %813 = vmatmul.mubr.f32.gmra.mrb[0].mxu0 %v275
        %v814 = vpop.f32.mrb[0].mxu0
        %v815 = vadd.f32 0.0, %v814
        %v816 = vpop.f32.mrb[0].mxu0
        %817 = vdwg.mxu0
        %v818 = vmul.f32 %v815, 0.11111111
        %s819 = scalar_lea.vmem %s153, 24 [#allocation5]
        %820 = vst.msk [vmem:[%s819] sm:$0xff] %vm348, %v818
        %s821 = sand.u32 %s68, 1
        %s822 = scalar_lea.sflag [#allocation4], %s821
        %s823 = sand.u32 %s68, 1
        %s824 = smul.addr %s823, 32
        %s825 = scalar_lea.vmem [#allocation5], %s824
        // Predicated region
        $region29: #{tpu_custom_call.1} parent=23 // pred_check
          %p826 = pneg %p78
        $region30: #{tpu_custom_call.1} parent=23 // pred_check_branch
          %828 = sbr.rel (%p826) target = $region32
        $region31: #{tpu_custom_call.1} parent=23 // pred_region
          %s829 = smul.u32 4, %s23
          %s831 = ssub.s32 512, 512
          %832 = vsyncadd %s822, %s831
          %s833 = smul.addr %s22, 4
          %s834 = sadd.s32 %s829, %s833
          %s835 = smul.addr %s834, 128
          %s836 = scalar_lea.hbm %s1, %s835
          %s837 = sshll.u32 %s825, 4
          %s838 = int_to_ptr.vmem [resolvable:$true] %s837
          %843 = dma.vmem_to_hbm [thread:$0]  %s838, 512, %s836, %s822, 128, 128, 8
        $region32: #{tpu_custom_call.1} parent=23 // pred_fallthru
          _
      $region24: #{tpu_custom_call.1} parent=5 // pred_fallthru
        _
      %p844 = scmp.le.s32.totalorder 2, %s13
      // Predicated region
      $region33: #{tpu_custom_call.1} parent=5 // pred_check
        %p845 = pneg %p844
      $region34: #{tpu_custom_call.1} parent=5 // pred_check_branch
        %847 = sbr.rel (%p845) target = $region36
      $region35: #{tpu_custom_call.1} parent=5 // pred_region
        %s848 = ssub.s32 %s13, 2
        // Predicated region
        $region37: #{tpu_custom_call.1} parent=35 // pred_check
          %p849 = pneg %p84
        $region38: #{tpu_custom_call.1} parent=35 // pred_check_branch
          %851 = sbr.rel (%p849) target = $region40
        $region39: #{tpu_custom_call.1} parent=35 // pred_region
          %s852 = sand.u32 %s69, 1
          %s853 = scalar_lea.sflag [#allocation4], %s852
          %s854 = sand.u32 %s69, 1
          %s855 = smul.addr %s854, 32
          %s856 = scalar_lea.vmem [#allocation5], %s855
          %857 = dma.done %s853, 512
        $region40: #{tpu_custom_call.1} parent=35 // pred_fallthru
          _
      $region36: #{tpu_custom_call.1} parent=5 // pred_fallthru
        _
    $region6: #{tpu_custom_call.1} parent=1 // loop_footer
      %s17 = sadd.s32 1, %s13
    $region7: #{tpu_custom_call.1} parent=1 // loop_footer_branch
      %12 = sbr.rel target = $region3
    $region8: #{tpu_custom_call.1} parent=1 // loop_exit
      _
    %858 = vsyncpa [#allocation3], 1
    %s859 = scalar_lea.sflag [#allocation3], 1
    %860 = vsyncpa %s859, 1
    %861 = vsyncpa [#allocation4], 1
    %s862 = scalar_lea.sflag [#allocation4], 1
    %863 = vsyncpa %s862, 1

</llo_original>
